<compile_context>
chip_gen: v6e
topology: v6e:2x2x1
jax: 0.10.0
libtpu: 0.0.40
codegen_flags: <defaults>
</compile_context>

<pallas_src>
import jax
import jax.numpy as jnp
from jax.experimental import pallas as pl
from jax.experimental.pallas import tpu as pltpu


def _complex_gaussian_kernel(sigma_ref, et_ref, e_ref, adj_r_ref, adj_i_ref):
    et = et_ref[...]          # (Bt, TI, C)  nodes on sublanes, channels on lanes
    e = e_ref[...]            # (Bt, C, TJ)  channels on sublanes, nodes on lanes
    sigma = sigma_ref[0]
    neg_var = -(sigma * sigma)

    C = e.shape[1]

    # Coordinate-channel differences, broadcast (Bt,TI,1)-(Bt,1,TJ).
    dx = et[:, :, 1:2] - e[:, 1:2, :]          # (Bt, TI, TJ)
    dy = et[:, :, 2:3] - e[:, 2:3, :]
    # s is reused both in sqdist and in the orientation normalizer (CSE).
    s = dx * dx + dy * dy

    d0 = et[:, :, 0:1] - e[:, 0:1, :]
    sqdist = s + d0 * d0
    for c in range(3, C):                      # unrolled over remaining channels
        dc = et[:, :, c : c + 1] - e[:, c : c + 1, :]
        sqdist = sqdist + dc * dc

    # gaussian(): adj = exp(-sqdist * sigma**2)   (sign folded into exp arg)
    adj = jnp.exp(sqdist * neg_var)
    # module defaults: diag=True (keep diagonal), norm=False (no row-stochastic)

    # Guarded rsqrt: diagonal / coincident points (s == 0) behave like the
    # reference's norm_diff += (norm_diff == 0)  =>  divide by 1  =>  output 0.
    # Keep the where-select form (rsqrt(0)=inf is discarded, never multiplied).
    inv = jnp.where(s > 0.0, jax.lax.rsqrt(s), 1.0)

    a = adj * inv
    adj_r_ref[...] = (a * dx).astype(adj_r_ref.dtype)
    adj_i_ref[...] = (a * dy).astype(adj_i_ref.dtype)


def _pick_tile(n, candidates):
    for t in candidates:
        if t <= n and n % t == 0:
            return t
    return n


def _choose_bt(B, n_i, n_j, cap, min_steps=8):
    """Largest divisor of B (<= cap) that keeps >= min_steps grid steps,
    falling back to >= 2 steps (parallel-axis split), then to 1."""
    divisors = [d for d in range(1, B + 1) if B % d == 0 and d <= cap]
    if not divisors:
        return 1
    for target in (min_steps, 2, 1):
        ok = [d for d in divisors if (B // d) * n_i * n_j >= target]
        if ok:
            return max(ok)
    return 1


def complex_gaussian(emb, sigma, out_dtype=jnp.float32):
    """emb: (B, C, N) float32, sigma: scalar parameter. Returns (adj_r, adj_i)."""
    B, C, N = emb.shape
    assert C >= 3, "ComplexGaussian needs at least 3 feature channels (coord = emb[:,1:3,:])"
    emb = emb.astype(jnp.float32)

    # Pad N to the next multiple of 128: keeps stores unmasked (lane-dense)
    # and VMEM bounded for any N. Padded rows/cols are sliced away at the end.
    N_pad = max(128, ((N + 127) // 128) * 128)
    emb_p = jnp.pad(emb, ((0, 0), (0, 0), (0, N_pad - N))) if N_pad != N else emb
    emb_t = jnp.transpose(emb_p, (0, 2, 1))               # (B, N_pad, C) glue transpose
    sigma = jnp.asarray(sigma, jnp.float32).reshape((1,))

    # Tiling: lane-wide TJ (up to 2048), TI = 128 sublanes.
    TI = 128
    TJ = _pick_tile(N_pad, (2048, 1024, 512, 256, 128))
    n_i, n_j = N_pad // TI, N_pad // TJ

    # Per-step element budget: 512K elems => 2 MiB per f32 output tile,
    # ~4 MiB written per step, ~20-24 MiB peak VMEM with intermediates.
    budget_elems = 512 * 1024
    cap = max(1, budget_elems // (TI * TJ))
    Bt = _choose_bt(B, n_i, n_j, cap)

    grid = (B // Bt, n_i, n_j)

    out_shape = (
        jax.ShapeDtypeStruct((B, N_pad, N_pad), out_dtype),
        jax.ShapeDtypeStruct((B, N_pad, N_pad), out_dtype),
    )
    in_specs = [
        pl.BlockSpec(memory_space=pltpu.MemorySpace.SMEM),            # sigma (scalar)
        pl.BlockSpec((Bt, TI, C), lambda b, i, j: (b, i, 0)),         # emb_t rows
        pl.BlockSpec((Bt, C, TJ), lambda b, i, j: (b, 0, j)),         # emb   cols
    ]
    out_specs = (
        pl.BlockSpec((Bt, TI, TJ), lambda b, i, j: (b, i, j)),
        pl.BlockSpec((Bt, TI, TJ), lambda b, i, j: (b, i, j)),
    )

    elems = B * N_pad * N_pad
    out_bytes = 2 * elems * jnp.dtype(out_dtype).itemsize
    in_bytes = 2 * B * C * N_pad * 4
    cost = pl.CostEstimate(
        flops=(3 * C + 8) * elems,          # ~20 VPU ops/element at C=4
        transcendentals=2 * elems,          # exp + rsqrt per element
        bytes_accessed=out_bytes + in_bytes,
    )

    adj_r, adj_i = pl.pallas_call(
        _complex_gaussian_kernel,
        out_shape=out_shape,
        grid=grid,
        in_specs=in_specs,
        out_specs=out_specs,
        compiler_params=pltpu.CompilerParams(
            dimension_semantics=("parallel", "parallel", "parallel"),
            vmem_limit_bytes=48 * 1024 * 1024,
        ),
        cost_estimate=cost,
    )(sigma, emb_t, emb_p)

    if N_pad != N:
        adj_r = adj_r[:, :N, :N]
        adj_i = adj_i[:, :N, :N]
    return adj_r, adj_i


def complex_gaussian_ref(emb, sigma):
    """Pure-JAX reference reproducing the PyTorch forward (defaults)."""
    d_all = emb[:, :, :, None] - emb[:, :, None, :]       # (B, C, N, N)
    sqdist = jnp.sum(d_all ** 2, axis=1)                  # (B, N, N)
    adj = jnp.exp(-sqdist * sigma ** 2)
    coord = emb[:, 1:3, :]
    d = coord[:, :, :, None] - coord[:, :, None, :]       # (B, 2, N, N)
    nd = jnp.sqrt(jnp.sum(d ** 2, axis=1))                # (B, N, N)
    nd = nd + (nd == 0).astype(nd.dtype)
    d = d / nd[:, None, :, :]
    return adj * d[:, 0], adj * d[:, 1]


if __name__ == "__main__":
    B, C = 2, 4
    key = jax.random.PRNGKey(0)
    k_emb, k_sigma = jax.random.split(key)

    # Parameter init as in __init__: sigma = rand(1) * 0.02 + 0.99 (deterministic here)
    sigma = jax.random.uniform(k_sigma, (1,), dtype=jnp.float32) * 0.02 + 0.99

    # Two small cases: 128-aligned N and a non-aligned N exercising the padding path.
    for N in (128, 200):
        emb = jax.random.normal(jax.random.fold_in(k_emb, N), (B, C, N), dtype=jnp.float32)

        adj_r, adj_i = complex_gaussian(emb, sigma)
        adj_r = jax.block_until_ready(adj_r)
        adj_i = jax.block_until_ready(adj_i)

        ref_r, ref_i = complex_gaussian_ref(emb, sigma[0])
        assert adj_r.shape == (B, N, N) and adj_i.shape == (B, N, N)
        assert jnp.allclose(adj_r, ref_r, atol=1e-4, rtol=1e-4)
        assert jnp.allclose(adj_i, ref_i, atol=1e-4, rtol=1e-4)

    print("KERNEL_OK")
</pallas_src>

<mosaic_0001>
module attributes {stable_mosaic.version = 11 : i64} {
  func.func @_complex_gaussian_kernel(%arg0: i32, %arg1: i32, %arg2: i32, %arg3: memref<1xf32, #tpu.memory_space<smem>>, %arg4: memref<1x128x4xf32, #tpu.memory_space<vmem>>, %arg5: memref<1x4x128xf32, #tpu.memory_space<vmem>>, %arg6: memref<1x128x128xf32, #tpu.memory_space<vmem>>, %arg7: memref<1x128x128xf32, #tpu.memory_space<vmem>>) attributes {dimension_semantics = [#tpu.dimension_semantics<parallel>, #tpu.dimension_semantics<parallel>, #tpu.dimension_semantics<parallel>], iteration_bounds = array<i64: 2, 1, 1>, scalar_prefetch = 0 : i64, scratch_operands = 0 : i64, tpu.core_type = #tpu.core_type<tc>, window_params = [{transform_indices = @transform_0, window_bounds = array<i64: 1>}, {transform_indices = @transform_1, window_bounds = array<i64: 1, 128, 4>}, {transform_indices = @transform_2, window_bounds = array<i64: 1, 4, 128>}, {transform_indices = @transform_3, window_bounds = array<i64: 1, 128, 128>}, {transform_indices = @transform_4, window_bounds = array<i64: 1, 128, 128>}]} {
    %c0 = arith.constant 0 : index
    %c0_0 = arith.constant 0 : index
    %c0_1 = arith.constant 0 : index
    %0 = vector.load %arg4[%c0, %c0_0, %c0_1] : memref<1x128x4xf32, #tpu.memory_space<vmem>>, vector<1x128x4xf32>
    %c0_2 = arith.constant 0 : index
    %c0_3 = arith.constant 0 : index
    %c0_4 = arith.constant 0 : index
    %1 = vector.load %arg5[%c0_2, %c0_3, %c0_4] : memref<1x4x128xf32, #tpu.memory_space<vmem>>, vector<1x4x128xf32>
    %c0_5 = arith.constant 0 : index
    %2 = memref.load %arg3[%c0_5] : memref<1xf32, #tpu.memory_space<smem>>
    %3 = arith.mulf %2, %2 : f32
    %cst = arith.constant 0.000000e+00 : f32
    %4 = arith.subf %cst, %3 : f32
    %5 = vector.extract_strided_slice %0 {offsets = [0, 0, 1], sizes = [1, 128, 1], strides = [1, 1, 1]} : vector<1x128x4xf32> to vector<1x128x1xf32>
    %6 = vector.extract_strided_slice %1 {offsets = [0, 1, 0], sizes = [1, 1, 128], strides = [1, 1, 1]} : vector<1x4x128xf32> to vector<1x1x128xf32>
    %7 = vector.broadcast %5 : vector<1x128x1xf32> to vector<1x128x128xf32>
    %8 = vector.broadcast %6 : vector<1x1x128xf32> to vector<1x128x128xf32>
    %9 = arith.subf %7, %8 : vector<1x128x128xf32>
    %10 = vector.extract_strided_slice %0 {offsets = [0, 0, 2], sizes = [1, 128, 1], strides = [1, 1, 1]} : vector<1x128x4xf32> to vector<1x128x1xf32>
    %11 = vector.extract_strided_slice %1 {offsets = [0, 2, 0], sizes = [1, 1, 128], strides = [1, 1, 1]} : vector<1x4x128xf32> to vector<1x1x128xf32>
    %12 = vector.broadcast %10 : vector<1x128x1xf32> to vector<1x128x128xf32>
    %13 = vector.broadcast %11 : vector<1x1x128xf32> to vector<1x128x128xf32>
    %14 = arith.subf %12, %13 : vector<1x128x128xf32>
    %15 = arith.mulf %9, %9 : vector<1x128x128xf32>
    %16 = arith.mulf %14, %14 : vector<1x128x128xf32>
    %17 = arith.addf %15, %16 : vector<1x128x128xf32>
    %18 = vector.extract_strided_slice %0 {offsets = [0, 0, 0], sizes = [1, 128, 1], strides = [1, 1, 1]} : vector<1x128x4xf32> to vector<1x128x1xf32>
    %19 = vector.extract_strided_slice %1 {offsets = [0, 0, 0], sizes = [1, 1, 128], strides = [1, 1, 1]} : vector<1x4x128xf32> to vector<1x1x128xf32>
    %20 = vector.broadcast %18 : vector<1x128x1xf32> to vector<1x128x128xf32>
    %21 = vector.broadcast %19 : vector<1x1x128xf32> to vector<1x128x128xf32>
    %22 = arith.subf %20, %21 : vector<1x128x128xf32>
    %23 = arith.mulf %22, %22 : vector<1x128x128xf32>
    %24 = arith.addf %17, %23 : vector<1x128x128xf32>
    %25 = vector.extract_strided_slice %0 {offsets = [0, 0, 3], sizes = [1, 128, 1], strides = [1, 1, 1]} : vector<1x128x4xf32> to vector<1x128x1xf32>
    %26 = vector.extract_strided_slice %1 {offsets = [0, 3, 0], sizes = [1, 1, 128], strides = [1, 1, 1]} : vector<1x4x128xf32> to vector<1x1x128xf32>
    %27 = vector.broadcast %25 : vector<1x128x1xf32> to vector<1x128x128xf32>
    %28 = vector.broadcast %26 : vector<1x1x128xf32> to vector<1x128x128xf32>
    %29 = arith.subf %27, %28 : vector<1x128x128xf32>
    %30 = arith.mulf %29, %29 : vector<1x128x128xf32>
    %31 = arith.addf %24, %30 : vector<1x128x128xf32>
    %32 = vector.broadcast %4 : f32 to vector<1x128x128xf32>
    %33 = arith.mulf %31, %32 : vector<1x128x128xf32>
    %34 = math.exp %33 : vector<1x128x128xf32>
    %cst_6 = arith.constant 0.000000e+00 : f32
    %35 = vector.broadcast %cst_6 : f32 to vector<1x128x128xf32>
    %36 = arith.cmpf ogt, %17, %35 : vector<1x128x128xf32>
    %37 = math.rsqrt %17 : vector<1x128x128xf32>
    %cst_7 = arith.constant 1.000000e+00 : f32
    %38 = vector.broadcast %cst_7 : f32 to vector<1x128x128xf32>
    %39 = arith.select %36, %37, %38 : vector<1x128x128xi1>, vector<1x128x128xf32>
    %40 = arith.mulf %34, %39 : vector<1x128x128xf32>
    %41 = arith.mulf %40, %9 : vector<1x128x128xf32>
    %c0_8 = arith.constant 0 : index
    %c0_9 = arith.constant 0 : index
    %c0_10 = arith.constant 0 : index
    %42 = vector.load %arg6[%c0_8, %c0_9, %c0_10] : memref<1x128x128xf32, #tpu.memory_space<vmem>>, vector<1x128x128xf32>
    tpu.vector_store %arg6[%c0_8, %c0_9, %c0_10], %41 {strides = array<i32>} : memref<1x128x128xf32, #tpu.memory_space<vmem>>, vector<1x128x128xf32>,
    %43 = arith.mulf %40, %14 : vector<1x128x128xf32>
    %c0_11 = arith.constant 0 : index
    %c0_12 = arith.constant 0 : index
    %c0_13 = arith.constant 0 : index
    %44 = vector.load %arg7[%c0_11, %c0_12, %c0_13] : memref<1x128x128xf32, #tpu.memory_space<vmem>>, vector<1x128x128xf32>
    tpu.vector_store %arg7[%c0_11, %c0_12, %c0_13], %43 {strides = array<i32>} : memref<1x128x128xf32, #tpu.memory_space<vmem>>, vector<1x128x128xf32>,
    return
  }
  func.func @transform_0(%arg0: i32, %arg1: i32, %arg2: i32) -> i32 {
    %c0_i32 = arith.constant 0 : i32
    %c0_i32_0 = arith.constant 0 : i32
    return %c0_i32 : i32
  }
  func.func @transform_1(%arg0: i32, %arg1: i32, %arg2: i32) -> (i32, i32, i32) {
    %c0_i32 = arith.constant 0 : i32
    %c0_i32_0 = arith.constant 0 : i32
    return %arg0, %arg1, %c0_i32 : i32, i32, i32
  }
  func.func @transform_2(%arg0: i32, %arg1: i32, %arg2: i32) -> (i32, i32, i32) {
    %c0_i32 = arith.constant 0 : i32
    %c0_i32_0 = arith.constant 0 : i32
    return %arg0, %c0_i32, %arg2 : i32, i32, i32
  }
  func.func @transform_3(%arg0: i32, %arg1: i32, %arg2: i32) -> (i32, i32, i32) {
    %c0_i32 = arith.constant 0 : i32
    return %arg0, %arg1, %arg2 : i32, i32, i32
  }
  func.func @transform_4(%arg0: i32, %arg1: i32, %arg2: i32) -> (i32, i32, i32) {
    %c0_i32 = arith.constant 0 : i32
    return %arg0, %arg1, %arg2 : i32, i32, i32
  }
}

</mosaic_0001>

<llo_original>
// kernel: tpu_custom_call.1
$region0: #{tpu_custom_call.1}
  #allocation0 [shape = 'u32[]', space=smem, size = 0x4, offset = 0x4, fixed_abs, tag = 'smem constant byte address 0x4 - core index']
  #allocation1 [shape = 'u32[144,128]{1,0:T(1,128)}', space=vmem, size = 0x12000, scoped, tag = 'internal scratch']
  #allocation2 [shape = 'f32[1]{0:T(128)S(6)}', space=smem, size = 0x200, scoped, tag = 'scoped memory for tpu_custom_call.1']
  %s0 = inlined_call_operand.<no memory space> [shape: f32[1], index: 0, kind: input, shape index: {}]
  %s1 = inlined_call_operand.vmem [shape: f32[2,128,4], index: 1, kind: input, shape index: {}]
  %s2 = inlined_call_operand.vmem [shape: f32[2,4,128], index: 2, kind: input, shape index: {}]
  %s3 = inlined_call_operand.hbm [shape: f32[2,128,128], index: 3, kind: output, shape index: {0}]
  %s4 = inlined_call_operand.hbm [shape: f32[2,128,128], index: 4, kind: output, shape index: {1}]
  %5 = xla_tuple %s3, %s4
  %s6 = sld [smem:[#allocation0]]
  $region53: #{tpu_custom_call.1} parent=0
    _
  %s8 = ssub.s32 1, %s6
  %s9 = scalar_select 0, %s8, %s6
  %10 = sst [smem:[#allocation2]] %s0
  $region1: #{tpu_custom_call.1} parent=0
    #allocation3 [shape = 'u8[131072]{0}', space=vmem, size = 0x20000, scoped, tag = 'output window, operand 0']
    #allocation4 [shape = 's32[2]{0}', space=sflag, size = 0x8, scoped, tag = 'scoped memory for tpu_custom_call.1']
    #allocation5 [shape = 'u8[131072]{0}', space=vmem, size = 0x20000, scoped, tag = 'output window, operand 1']
    #allocation6 [shape = 's32[2]{0}', space=sflag, size = 0x8, scoped, tag = 'scoped memory for tpu_custom_call.1']
    %11 = vsyncpa [#allocation4], 0
    %s12 = scalar_lea.sflag [#allocation4], 1
    %13 = vsyncpa %s12, 0
    %14 = vsyncpa [#allocation6], 0
    %s15 = scalar_lea.sflag [#allocation6], 1
    %16 = vsyncpa %s15, 0
    loop: start=0, step=1, limit=4
    $region2: #{tpu_custom_call.1} parent=1 // loop_pre_header
      _
    $region3: #{tpu_custom_call.1} parent=1 // loop_header
      %s18 = sphi 0, %s22
      %p19 = scmp.ge.s32.totalorder %s18, 4
      %s25 = sphi 0, %s44
      %s26 = sphi 0, %s40
      %s27 = sphi 0, %s36
      %s28 = sphi 0, %s25
      %s29 = sphi 0, %s26
      %s30 = sphi 0, %s27
      %s31 = sphi 0, %s28
      %s32 = sphi 0, %s29
      %s33 = sphi 0, %s30
      %s45 = sphi 0, %s45
      %s47 = sphi 0, %s45
      %s48 = sphi 0, %s47
      %s62 = sphi 0, %s48
      %s70 = sphi 0, %s72
      %s73 = sphi 0, %s70
      %s74 = sphi 0, %s73
      %s90 = sphi 0, %s74
      %s98 = sphi 0, %s100
      %s101 = sphi 0, %s98
      %s102 = sphi 0, %s101
      %s118 = sphi 0, %s102
      %s128 = sphi 0, %s130
      %s131 = sphi 0, %s128
      %s132 = sphi 0, %s131
      %s148 = sphi 0, %s132
      %s158 = sphi 0, %s160
      %s161 = sphi 0, %s158
      %s162 = sphi 0, %s161
      %s178 = sphi 0, %s162
    $region4: #{tpu_custom_call.1} parent=1 // loop_header_branch
      %21 = sbr.rel (%p19) target = $region8
    $region5: #{tpu_custom_call.1} parent=1 // loop_body
      %s23 = ssub.s32 %s18, 1
      %s24 = ssub.s32 %s18, 2
      %s34 = sadd.s32 1, %s27
      %p35 = scmp.ge.s32.totalorder %s34, 1
      %s36 = scalar_select %p35, 0, %s34
      %s37 = sadd.s32 1, %s26
      %s38 = scalar_select %p35, %s37, %s26
      %p39 = scmp.ge.s32.totalorder %s38, 1
      %s40 = scalar_select %p39, 0, %s38
      %s41 = sadd.s32 1, %s25
      %s42 = scalar_select %p39, %s41, %s25
      %p43 = scmp.ge.s32.totalorder %s42, 2
      %s44 = scalar_select %p43, 0, %s42
      %s46 = sadd.s32 %s45, 1
      %p49 = scmp.eq.s32.totalorder %s18, 1
      %p50 = scmp.ne.s32.totalorder %s45, %s47
      %p51 = scmp.eq.s32.totalorder %s18, 0
      %p52 = por %p50, %p51
      %p53 = scmp.ne.s32.totalorder %s45, %s47
      %p54 = scmp.eq.s32.totalorder %s23, 1
      %p55 = por %p53, %p54
      %p56 = scmp.ne.s32.totalorder %s47, %s48
      %p57 = scmp.eq.s32.totalorder %s23, 0
      %p58 = por %p56, %p57
      %p59 = scmp.ne.s32.totalorder %s47, %s48
      %p60 = scmp.eq.s32.totalorder %s24, 1
      %p61 = por %p59, %p60
      %p63 = scmp.ne.s32.totalorder %s48, %s62
      %p64 = scmp.eq.s32.totalorder %s24, 0
      %p65 = por %p63, %p64
      %s66 = ssub.s32 %s25, %s44
      %s67 = ssub.s32 %s26, %s40
      %s68 = sor.u32 %s66, %s67
      %p69 = scmp.eq.s32.totalorder %s68, 0
      %s71 = sadd.s32 %s70, 1
      %s72 = scalar_select %p69, %s70, %s71
      %p75 = pneg %p69
      %p76 = scmp.eq.s32.totalorder %s18, 1
      %p77 = por %p75, %p76
      %p78 = scmp.ne.s32.totalorder %s70, %s73
      %p79 = scmp.eq.s32.totalorder %s18, 0
      %p80 = por %p78, %p79
      %p81 = scmp.ne.s32.totalorder %s70, %s73
      %p82 = scmp.eq.s32.totalorder %s23, 1
      %p83 = por %p81, %p82
      %p84 = scmp.ne.s32.totalorder %s73, %s74
      %p85 = scmp.eq.s32.totalorder %s23, 0
      %p86 = por %p84, %p85
      %p87 = scmp.ne.s32.totalorder %s73, %s74
      %p88 = scmp.eq.s32.totalorder %s24, 1
      %p89 = por %p87, %p88
      %p91 = scmp.ne.s32.totalorder %s74, %s90
      %p92 = scmp.eq.s32.totalorder %s24, 0
      %p93 = por %p91, %p92
      %s94 = ssub.s32 %s25, %s44
      %s95 = ssub.s32 %s27, %s36
      %s96 = sor.u32 %s94, %s95
      %p97 = scmp.eq.s32.totalorder %s96, 0
      %s99 = sadd.s32 %s98, 1
      %s100 = scalar_select %p97, %s98, %s99
      %p103 = pneg %p97
      %p104 = scmp.eq.s32.totalorder %s18, 1
      %p105 = por %p103, %p104
      %p106 = scmp.ne.s32.totalorder %s98, %s101
      %p107 = scmp.eq.s32.totalorder %s18, 0
      %p108 = por %p106, %p107
      %p109 = scmp.ne.s32.totalorder %s98, %s101
      %p110 = scmp.eq.s32.totalorder %s23, 1
      %p111 = por %p109, %p110
      %p112 = scmp.ne.s32.totalorder %s101, %s102
      %p113 = scmp.eq.s32.totalorder %s23, 0
      %p114 = por %p112, %p113
      %p115 = scmp.ne.s32.totalorder %s101, %s102
      %p116 = scmp.eq.s32.totalorder %s24, 1
      %p117 = por %p115, %p116
      %p119 = scmp.ne.s32.totalorder %s102, %s118
      %p120 = scmp.eq.s32.totalorder %s24, 0
      %p121 = por %p119, %p120
      %s122 = ssub.s32 %s25, %s44
      %s123 = ssub.s32 %s26, %s40
      %s124 = sor.u32 %s122, %s123
      %s125 = ssub.s32 %s27, %s36
      %s126 = sor.u32 %s124, %s125
      %p127 = scmp.eq.s32.totalorder %s126, 0
      %s129 = sadd.s32 %s128, 1
      %s130 = scalar_select %p127, %s128, %s129
      %p133 = pneg %p127
      %p134 = scmp.eq.s32.totalorder %s18, 1
      %p135 = por %p133, %p134
      %p136 = scmp.ne.s32.totalorder %s128, %s131
      %p137 = scmp.eq.s32.totalorder %s18, 0
      %p138 = por %p136, %p137
      %p139 = scmp.ne.s32.totalorder %s128, %s131
      %p140 = scmp.eq.s32.totalorder %s23, 1
      %p141 = por %p139, %p140
      %p142 = scmp.ne.s32.totalorder %s131, %s132
      %p143 = scmp.eq.s32.totalorder %s23, 0
      %p144 = por %p142, %p143
      %p145 = scmp.ne.s32.totalorder %s131, %s132
      %p146 = scmp.eq.s32.totalorder %s24, 1
      %p147 = por %p145, %p146
      %p149 = scmp.ne.s32.totalorder %s132, %s148
      %p150 = scmp.eq.s32.totalorder %s24, 0
      %p151 = por %p149, %p150
      %s152 = ssub.s32 %s25, %s44
      %s153 = ssub.s32 %s26, %s40
      %s154 = sor.u32 %s152, %s153
      %s155 = ssub.s32 %s27, %s36
      %s156 = sor.u32 %s154, %s155
      %p157 = scmp.eq.s32.totalorder %s156, 0
      %s159 = sadd.s32 %s158, 1
      %s160 = scalar_select %p157, %s158, %s159
      %p163 = pneg %p157
      %p164 = scmp.eq.s32.totalorder %s18, 1
      %p165 = por %p163, %p164
      %p166 = scmp.ne.s32.totalorder %s158, %s161
      %p167 = scmp.eq.s32.totalorder %s18, 0
      %p168 = por %p166, %p167
      %p169 = scmp.ne.s32.totalorder %s158, %s161
      %p170 = scmp.eq.s32.totalorder %s23, 1
      %p171 = por %p169, %p170
      %p172 = scmp.ne.s32.totalorder %s161, %s162
      %p173 = scmp.eq.s32.totalorder %s23, 0
      %p174 = por %p172, %p173
      %p175 = scmp.ne.s32.totalorder %s161, %s162
      %p176 = scmp.eq.s32.totalorder %s24, 1
      %p177 = por %p175, %p176
      %p179 = scmp.ne.s32.totalorder %s162, %s178
      %p180 = scmp.eq.s32.totalorder %s24, 0
      %p181 = por %p179, %p180
      %p182 = scmp.le.s32.totalorder 1, %s18
      %p183 = scmp.lt.s32.totalorder %s18, 3
      %p184 = pnand %p182, %p183
      %p185 = pneg %p184
      // Predicated region
      $region9: #{tpu_custom_call.1} parent=5 // pred_check
        _
      $region10: #{tpu_custom_call.1} parent=5 // pred_check_branch
        %187 = sbr.rel (%p184) target = $region12
      $region11: #{tpu_custom_call.1} parent=5 // pred_region
        %s188 = ssub.s32 %s18, 1
        // Predicated region
        $region13: #{tpu_custom_call.1} parent=11 // pred_check
          %p189 = pneg %p58
        $region14: #{tpu_custom_call.1} parent=11 // pred_check_branch
          %191 = sbr.rel (%p189) target = $region16
        $region15: #{tpu_custom_call.1} parent=11 // pred_region
          _
        $region16: #{tpu_custom_call.1} parent=11 // pred_fallthru
          _
      $region12: #{tpu_custom_call.1} parent=5 // pred_fallthru
        _
      %p192 = scmp.lt.s32.totalorder %s18, 2
      // Predicated region
      $region17: #{tpu_custom_call.1} parent=5 // pred_check
        %p193 = pneg %p192
      $region18: #{tpu_custom_call.1} parent=5 // pred_check_branch
        %195 = sbr.rel (%p193) target = $region20
      $region19: #{tpu_custom_call.1} parent=5 // pred_region
        // Predicated region
        $region21: #{tpu_custom_call.1} parent=19 // pred_check
          %p196 = pneg %p80
        $region22: #{tpu_custom_call.1} parent=19 // pred_check_branch
          %198 = sbr.rel (%p196) target = $region24
        $region23: #{tpu_custom_call.1} parent=19 // pred_region
          %s199 = smul.u32 16, %s26
          %p200 = scmp.lt.s32.totalorder %s25, 1
          %s201 = scalar_select %p200, %s25, 1
          %p202 = scmp.lt.s32.totalorder %s199, 15
          %s203 = scalar_select %p202, %s199, 15
          %s204 = smul.addr %s201, 16
          %s205 = sadd.s32 %s203, %s204
          %s206 = smul.addr %s205, 8
          %s207 = scalar_lea.vmem %s1, %s206
          %s208 = smul.u32 16, %s26
        $region24: #{tpu_custom_call.1} parent=19 // pred_fallthru
          _
        // Predicated region
        $region25: #{tpu_custom_call.1} parent=19 // pred_check
          %p209 = pneg %p108
        $region26: #{tpu_custom_call.1} parent=19 // pred_check_branch
          %211 = sbr.rel (%p209) target = $region28
        $region27: #{tpu_custom_call.1} parent=19 // pred_region
          %p212 = scmp.lt.s32.totalorder %s25, 1
          %s213 = scalar_select %p212, %s25, 1
          %p214 = scmp.lt.s32.totalorder %s27, 0
          %s215 = scalar_select %p214, %s27, 0
          %s216 = sadd.s32 %s215, %s213
          %s217 = smul.addr %s216, 4
          %s218 = scalar_lea.vmem %s2, %s217
        $region28: #{tpu_custom_call.1} parent=19 // pred_fallthru
          _
      $region20: #{tpu_custom_call.1} parent=5 // pred_fallthru
        _
      %p219 = scmp.le.s32.totalorder 1, %s18
      %p220 = scmp.lt.s32.totalorder %s18, 3
      %p221 = pnand %p219, %p220
      %p222 = pneg %p221
      // Predicated region
      $region29: #{tpu_custom_call.1} parent=5 // pred_check
        _
      $region30: #{tpu_custom_call.1} parent=5 // pred_check_branch
        %224 = sbr.rel (%p221) target = $region32
      $region31: #{tpu_custom_call.1} parent=5 // pred_region
        %s225 = ssub.s32 %s18, 1
        %p226 = pneg %p58
        %p227 = pneg %p55
        %s228 = smul.u32 16, %s29
        %p229 = scmp.lt.s32.totalorder %s28, 1
        %s230 = scalar_select %p229, %s28, 1
        %p231 = scmp.lt.s32.totalorder %s228, 15
        %s232 = scalar_select %p231, %s228, 15
        %s233 = smul.addr %s230, 16
        %s234 = sadd.s32 %s232, %s233
        %s235 = smul.addr %s234, 8
        %s236 = scalar_lea.vmem %s1, %s235
        %p237 = pneg %p86
        %p238 = pneg %p83
        %p239 = scmp.lt.s32.totalorder %s28, 1
        %s240 = scalar_select %p239, %s28, 1
        %p241 = scmp.lt.s32.totalorder %s30, 0
        %s242 = scalar_select %p241, %s30, 0
        %s243 = sadd.s32 %s242, %s240
        %s244 = smul.addr %s243, 4
        %s245 = scalar_lea.vmem %s2, %s244
        %p246 = pneg %p114
        %p247 = pneg %p111
        %p248 = pneg %p144
        %p249 = pneg %p141
        %s250 = sand.u32 %s131, 1
        %s251 = scalar_lea.sflag [#allocation4], %s250
        %s252 = sand.u32 %s131, 1
        %s253 = smul.addr %s252, 128
        %s254 = scalar_lea.vmem [#allocation3], %s253
        %p255 = pneg %p174
        %p256 = pneg %p171
        %s257 = sand.u32 %s161, 1
        %s258 = scalar_lea.sflag [#allocation6], %s257
        %s259 = sand.u32 %s161, 1
        %s260 = smul.addr %s259, 128
        %s261 = scalar_lea.vmem [#allocation5], %s260
        %s262 = smul.u32 16, %s29
        %p263 = scmp.lt.s32.totalorder %s28, 1
        %s264 = scalar_select %p263, %s28, 1
        %p265 = scmp.lt.s32.totalorder %s262, 15
        %s266 = scalar_select %p265, %s262, 15
        %s267 = smul.addr %s264, 16
        %s268 = sadd.s32 %s266, %s267
        %s269 = smul.addr %s268, 8
        %s270 = scalar_lea.vmem %s1, %s269
        %s271 = smul.u32 16, %s29
        %p272 = scmp.lt.s32.totalorder %s28, 1
        %s273 = scalar_select %p272, %s28, 1
        %p274 = scmp.lt.s32.totalorder %s30, 0
        %s275 = scalar_select %p274, %s30, 0
        %s276 = sadd.s32 %s275, %s273
        %s277 = smul.addr %s276, 4
        %s278 = scalar_lea.vmem %s2, %s277
        %s279 = smul.u32 16, %s29
        %s280 = smul.u32 16, %s29
        %v281 = vld [vmem:[%s270] sm:$0xff]
        %v282 = vld [vmem:[%s270 + $0x8] sm:$0xff]
        %v283 = vld [vmem:[%s270 + $0x10] sm:$0xff]
        %v284 = vld [vmem:[%s270 + $0x18] sm:$0xff]
        %v285 = vld [vmem:[%s270 + $0x20] sm:$0xff]
        %v286 = vld [vmem:[%s270 + $0x28] sm:$0xff]
        %v287 = vld [vmem:[%s270 + $0x30] sm:$0xff]
        %v288 = vld [vmem:[%s270 + $0x38] sm:$0xff]
        %v289 = vld [vmem:[%s270 + $0x40] sm:$0xff]
        %v290 = vld [vmem:[%s270 + $0x48] sm:$0xff]
        %v291 = vld [vmem:[%s270 + $0x50] sm:$0xff]
        %v292 = vld [vmem:[%s270 + $0x58] sm:$0xff]
        %v293 = vld [vmem:[%s270 + $0x60] sm:$0xff]
        %v294 = vld [vmem:[%s270 + $0x68] sm:$0xff]
        %v295 = vld [vmem:[%s270 + $0x70] sm:$0xff]
        %v296 = vld [vmem:[%s270 + $0x78] sm:$0xff]
        %v297 = vld [vmem:[%s278] sm:$0xf]
        %s298 = sld [smem:[#allocation2]]
        %s299 = smul.f32 %s298, %s298
        %s300 = ssub.f32 0.0, %s299
        %302 = vset.pattern.permute.xlu0 1
        %303 = vperm.xlu0 %302, %v281
        %v304 = vpop.permute.xlu0 %303
        %307 = vset.pattern.permute.xlu0 1
        %308 = vperm.xlu0 %307, %v282
        %v309 = vpop.permute.xlu0 %308
        %312 = vset.pattern.permute.xlu0 1
        %313 = vperm.xlu0 %312, %v283
        %v314 = vpop.permute.xlu0 %313
        %317 = vset.pattern.permute.xlu0 1
        %318 = vperm.xlu0 %317, %v284
        %v319 = vpop.permute.xlu0 %318
        %322 = vset.pattern.permute.xlu0 1
        %323 = vperm.xlu0 %322, %v285
        %v324 = vpop.permute.xlu0 %323
        %327 = vset.pattern.permute.xlu0 1
        %328 = vperm.xlu0 %327, %v286
        %v329 = vpop.permute.xlu0 %328
        %332 = vset.pattern.permute.xlu0 1
        %333 = vperm.xlu0 %332, %v287
        %v334 = vpop.permute.xlu0 %333
        %337 = vset.pattern.permute.xlu0 1
        %338 = vperm.xlu0 %337, %v288
        %v339 = vpop.permute.xlu0 %338
        %342 = vset.pattern.permute.xlu0 1
        %343 = vperm.xlu0 %342, %v289
        %v344 = vpop.permute.xlu0 %343
        %347 = vset.pattern.permute.xlu0 1
        %348 = vperm.xlu0 %347, %v290
        %v349 = vpop.permute.xlu0 %348
        %352 = vset.pattern.permute.xlu0 1
        %353 = vperm.xlu0 %352, %v291
        %v354 = vpop.permute.xlu0 %353
        %357 = vset.pattern.permute.xlu0 1
        %358 = vperm.xlu0 %357, %v292
        %v359 = vpop.permute.xlu0 %358
        %362 = vset.pattern.permute.xlu0 1
        %363 = vperm.xlu0 %362, %v293
        %v364 = vpop.permute.xlu0 %363
        %367 = vset.pattern.permute.xlu0 1
        %368 = vperm.xlu0 %367, %v294
        %v369 = vpop.permute.xlu0 %368
        %372 = vset.pattern.permute.xlu0 1
        %373 = vperm.xlu0 %372, %v295
        %v374 = vpop.permute.xlu0 %373
        %377 = vset.pattern.permute.xlu0 1
        %378 = vperm.xlu0 %377, %v296
        %v379 = vpop.permute.xlu0 %378
        %v381 = vlaneseq
        %v382 = vshrl.u32 %v381, 7
        %v383 = vsub.s32 1, %v382
        %v384 = vrot.slane %v297, %v383
        %v385 = vsub.f32 %v304, %v384
        %v386 = vsub.f32 %v309, %v384
        %v387 = vsub.f32 %v314, %v384
        %v388 = vsub.f32 %v319, %v384
        %v389 = vsub.f32 %v324, %v384
        %v390 = vsub.f32 %v329, %v384
        %v391 = vsub.f32 %v334, %v384
        %v392 = vsub.f32 %v339, %v384
        %v393 = vsub.f32 %v344, %v384
        %v394 = vsub.f32 %v349, %v384
        %v395 = vsub.f32 %v354, %v384
        %v396 = vsub.f32 %v359, %v384
        %v397 = vsub.f32 %v364, %v384
        %v398 = vsub.f32 %v369, %v384
        %v399 = vsub.f32 %v374, %v384
        %v400 = vsub.f32 %v379, %v384
        %401 = vset.pattern.permute.xlu0 2
        %402 = vperm.xlu0 %401, %v281
        %v403 = vpop.permute.xlu0 %402
        %405 = vset.pattern.permute.xlu0 2
        %406 = vperm.xlu0 %405, %v282
        %v407 = vpop.permute.xlu0 %406
        %409 = vset.pattern.permute.xlu0 2
        %410 = vperm.xlu0 %409, %v283
        %v411 = vpop.permute.xlu0 %410
        %413 = vset.pattern.permute.xlu0 2
        %414 = vperm.xlu0 %413, %v284
        %v415 = vpop.permute.xlu0 %414
        %417 = vset.pattern.permute.xlu0 2
        %418 = vperm.xlu0 %417, %v285
        %v419 = vpop.permute.xlu0 %418
        %421 = vset.pattern.permute.xlu0 2
        %422 = vperm.xlu0 %421, %v286
        %v423 = vpop.permute.xlu0 %422
        %425 = vset.pattern.permute.xlu0 2
        %426 = vperm.xlu0 %425, %v287
        %v427 = vpop.permute.xlu0 %426
        %429 = vset.pattern.permute.xlu0 2
        %430 = vperm.xlu0 %429, %v288
        %v431 = vpop.permute.xlu0 %430
        %433 = vset.pattern.permute.xlu0 2
        %434 = vperm.xlu0 %433, %v289
        %v435 = vpop.permute.xlu0 %434
        %437 = vset.pattern.permute.xlu0 2
        %438 = vperm.xlu0 %437, %v290
        %v439 = vpop.permute.xlu0 %438
        %441 = vset.pattern.permute.xlu0 2
        %442 = vperm.xlu0 %441, %v291
        %v443 = vpop.permute.xlu0 %442
        %445 = vset.pattern.permute.xlu0 2
        %446 = vperm.xlu0 %445, %v292
        %v447 = vpop.permute.xlu0 %446
        %449 = vset.pattern.permute.xlu0 2
        %450 = vperm.xlu0 %449, %v293
        %v451 = vpop.permute.xlu0 %450
        %453 = vset.pattern.permute.xlu0 2
        %454 = vperm.xlu0 %453, %v294
        %v455 = vpop.permute.xlu0 %454
        %457 = vset.pattern.permute.xlu0 2
        %458 = vperm.xlu0 %457, %v295
        %v459 = vpop.permute.xlu0 %458
        %461 = vset.pattern.permute.xlu0 2
        %462 = vperm.xlu0 %461, %v296
        %v463 = vpop.permute.xlu0 %462
        %v465 = vlaneseq
        %v466 = vshrl.u32 %v465, 7
        %v467 = vsub.s32 2, %v466
        %v468 = vrot.slane %v297, %v467
        %v469 = vsub.f32 %v403, %v468
        %v470 = vsub.f32 %v407, %v468
        %v471 = vsub.f32 %v411, %v468
        %v472 = vsub.f32 %v415, %v468
        %v473 = vsub.f32 %v419, %v468
        %v474 = vsub.f32 %v423, %v468
        %v475 = vsub.f32 %v427, %v468
        %v476 = vsub.f32 %v431, %v468
        %v477 = vsub.f32 %v435, %v468
        %v478 = vsub.f32 %v439, %v468
        %v479 = vsub.f32 %v443, %v468
        %v480 = vsub.f32 %v447, %v468
        %v481 = vsub.f32 %v451, %v468
        %v482 = vsub.f32 %v455, %v468
        %v483 = vsub.f32 %v459, %v468
        %v484 = vsub.f32 %v463, %v468
        %v485 = vmul.f32 %v385, %v385
        %v486 = vmul.f32 %v386, %v386
        %v487 = vmul.f32 %v387, %v387
        %v488 = vmul.f32 %v388, %v388
        %v489 = vmul.f32 %v389, %v389
        %v490 = vmul.f32 %v390, %v390
        %v491 = vmul.f32 %v391, %v391
        %v492 = vmul.f32 %v392, %v392
        %v493 = vmul.f32 %v393, %v393
        %v494 = vmul.f32 %v394, %v394
        %v495 = vmul.f32 %v395, %v395
        %v496 = vmul.f32 %v396, %v396
        %v497 = vmul.f32 %v397, %v397
        %v498 = vmul.f32 %v398, %v398
        %v499 = vmul.f32 %v399, %v399
        %v500 = vmul.f32 %v400, %v400
        %v501 = vmul.f32 %v469, %v469
        %v502 = vmul.f32 %v470, %v470
        %v503 = vmul.f32 %v471, %v471
        %v504 = vmul.f32 %v472, %v472
        %v505 = vmul.f32 %v473, %v473
        %v506 = vmul.f32 %v474, %v474
        %v507 = vmul.f32 %v475, %v475
        %v508 = vmul.f32 %v476, %v476
        %v509 = vmul.f32 %v477, %v477
        %v510 = vmul.f32 %v478, %v478
        %v511 = vmul.f32 %v479, %v479
        %v512 = vmul.f32 %v480, %v480
        %v513 = vmul.f32 %v481, %v481
        %v514 = vmul.f32 %v482, %v482
        %v515 = vmul.f32 %v483, %v483
        %v516 = vmul.f32 %v484, %v484
        %v517 = vadd.f32 %v485, %v501
        %v518 = vadd.f32 %v486, %v502
        %v519 = vadd.f32 %v487, %v503
        %v520 = vadd.f32 %v488, %v504
        %v521 = vadd.f32 %v489, %v505
        %v522 = vadd.f32 %v490, %v506
        %v523 = vadd.f32 %v491, %v507
        %v524 = vadd.f32 %v492, %v508
        %v525 = vadd.f32 %v493, %v509
        %v526 = vadd.f32 %v494, %v510
        %v527 = vadd.f32 %v495, %v511
        %v528 = vadd.f32 %v496, %v512
        %v529 = vadd.f32 %v497, %v513
        %v530 = vadd.f32 %v498, %v514
        %v531 = vadd.f32 %v499, %v515
        %v532 = vadd.f32 %v500, %v516
        %533 = vset.pattern.permute.xlu0 0
        %534 = vperm.xlu0 %533, %v281
        %v535 = vpop.permute.xlu0 %534
        %537 = vset.pattern.permute.xlu0 0
        %538 = vperm.xlu0 %537, %v282
        %v539 = vpop.permute.xlu0 %538
        %541 = vset.pattern.permute.xlu0 0
        %542 = vperm.xlu0 %541, %v283
        %v543 = vpop.permute.xlu0 %542
        %545 = vset.pattern.permute.xlu0 0
        %546 = vperm.xlu0 %545, %v284
        %v547 = vpop.permute.xlu0 %546
        %549 = vset.pattern.permute.xlu0 0
        %550 = vperm.xlu0 %549, %v285
        %v551 = vpop.permute.xlu0 %550
        %553 = vset.pattern.permute.xlu0 0
        %554 = vperm.xlu0 %553, %v286
        %v555 = vpop.permute.xlu0 %554
        %557 = vset.pattern.permute.xlu0 0
        %558 = vperm.xlu0 %557, %v287
        %v559 = vpop.permute.xlu0 %558
        %561 = vset.pattern.permute.xlu0 0
        %562 = vperm.xlu0 %561, %v288
        %v563 = vpop.permute.xlu0 %562
        %565 = vset.pattern.permute.xlu0 0
        %566 = vperm.xlu0 %565, %v289
        %v567 = vpop.permute.xlu0 %566
        %569 = vset.pattern.permute.xlu0 0
        %570 = vperm.xlu0 %569, %v290
        %v571 = vpop.permute.xlu0 %570
        %573 = vset.pattern.permute.xlu0 0
        %574 = vperm.xlu0 %573, %v291
        %v575 = vpop.permute.xlu0 %574
        %577 = vset.pattern.permute.xlu0 0
        %578 = vperm.xlu0 %577, %v292
        %v579 = vpop.permute.xlu0 %578
        %581 = vset.pattern.permute.xlu0 0
        %582 = vperm.xlu0 %581, %v293
        %v583 = vpop.permute.xlu0 %582
        %585 = vset.pattern.permute.xlu0 0
        %586 = vperm.xlu0 %585, %v294
        %v587 = vpop.permute.xlu0 %586
        %589 = vset.pattern.permute.xlu0 0
        %590 = vperm.xlu0 %589, %v295
        %v591 = vpop.permute.xlu0 %590
        %593 = vset.pattern.permute.xlu0 0
        %594 = vperm.xlu0 %593, %v296
        %v595 = vpop.permute.xlu0 %594
        %v597 = vlaneseq
        %v598 = vshrl.u32 %v597, 7
        %v599 = vsub.s32 0, %v598
        %v600 = vrot.slane %v297, %v599
        %v601 = vsub.f32 %v535, %v600
        %v602 = vsub.f32 %v539, %v600
        %v603 = vsub.f32 %v543, %v600
        %v604 = vsub.f32 %v547, %v600
        %v605 = vsub.f32 %v551, %v600
        %v606 = vsub.f32 %v555, %v600
        %v607 = vsub.f32 %v559, %v600
        %v608 = vsub.f32 %v563, %v600
        %v609 = vsub.f32 %v567, %v600
        %v610 = vsub.f32 %v571, %v600
        %v611 = vsub.f32 %v575, %v600
        %v612 = vsub.f32 %v579, %v600
        %v613 = vsub.f32 %v583, %v600
        %v614 = vsub.f32 %v587, %v600
        %v615 = vsub.f32 %v591, %v600
        %v616 = vsub.f32 %v595, %v600
        %v617 = vmul.f32 %v601, %v601
        %v618 = vmul.f32 %v602, %v602
        %v619 = vmul.f32 %v603, %v603
        %v620 = vmul.f32 %v604, %v604
        %v621 = vmul.f32 %v605, %v605
        %v622 = vmul.f32 %v606, %v606
        %v623 = vmul.f32 %v607, %v607
        %v624 = vmul.f32 %v608, %v608
        %v625 = vmul.f32 %v609, %v609
        %v626 = vmul.f32 %v610, %v610
        %v627 = vmul.f32 %v611, %v611
        %v628 = vmul.f32 %v612, %v612
        %v629 = vmul.f32 %v613, %v613
        %v630 = vmul.f32 %v614, %v614
        %v631 = vmul.f32 %v615, %v615
        %v632 = vmul.f32 %v616, %v616
        %v633 = vadd.f32 %v517, %v617
        %v634 = vadd.f32 %v518, %v618
        %v635 = vadd.f32 %v519, %v619
        %v636 = vadd.f32 %v520, %v620
        %v637 = vadd.f32 %v521, %v621
        %v638 = vadd.f32 %v522, %v622
        %v639 = vadd.f32 %v523, %v623
        %v640 = vadd.f32 %v524, %v624
        %v641 = vadd.f32 %v525, %v625
        %v642 = vadd.f32 %v526, %v626
        %v643 = vadd.f32 %v527, %v627
        %v644 = vadd.f32 %v528, %v628
        %v645 = vadd.f32 %v529, %v629
        %v646 = vadd.f32 %v530, %v630
        %v647 = vadd.f32 %v531, %v631
        %v648 = vadd.f32 %v532, %v632
        %649 = vset.pattern.permute.xlu0 3
        %650 = vperm.xlu0 %649, %v281
        %v651 = vpop.permute.xlu0 %650
        %653 = vset.pattern.permute.xlu0 3
        %654 = vperm.xlu0 %653, %v282
        %v655 = vpop.permute.xlu0 %654
        %657 = vset.pattern.permute.xlu0 3
        %658 = vperm.xlu0 %657, %v283
        %v659 = vpop.permute.xlu0 %658
        %661 = vset.pattern.permute.xlu0 3
        %662 = vperm.xlu0 %661, %v284
        %v663 = vpop.permute.xlu0 %662
        %665 = vset.pattern.permute.xlu0 3
        %666 = vperm.xlu0 %665, %v285
        %v667 = vpop.permute.xlu0 %666
        %669 = vset.pattern.permute.xlu0 3
        %670 = vperm.xlu0 %669, %v286
        %v671 = vpop.permute.xlu0 %670
        %673 = vset.pattern.permute.xlu0 3
        %674 = vperm.xlu0 %673, %v287
        %v675 = vpop.permute.xlu0 %674
        %677 = vset.pattern.permute.xlu0 3
        %678 = vperm.xlu0 %677, %v288
        %v679 = vpop.permute.xlu0 %678
        %681 = vset.pattern.permute.xlu0 3
        %682 = vperm.xlu0 %681, %v289
        %v683 = vpop.permute.xlu0 %682
        %685 = vset.pattern.permute.xlu0 3
        %686 = vperm.xlu0 %685, %v290
        %v687 = vpop.permute.xlu0 %686
        %689 = vset.pattern.permute.xlu0 3
        %690 = vperm.xlu0 %689, %v291
        %v691 = vpop.permute.xlu0 %690
        %693 = vset.pattern.permute.xlu0 3
        %694 = vperm.xlu0 %693, %v292
        %v695 = vpop.permute.xlu0 %694
        %697 = vset.pattern.permute.xlu0 3
        %698 = vperm.xlu0 %697, %v293
        %v699 = vpop.permute.xlu0 %698
        %701 = vset.pattern.permute.xlu0 3
        %702 = vperm.xlu0 %701, %v294
        %v703 = vpop.permute.xlu0 %702
        %705 = vset.pattern.permute.xlu0 3
        %706 = vperm.xlu0 %705, %v295
        %v707 = vpop.permute.xlu0 %706
        %709 = vset.pattern.permute.xlu0 3
        %710 = vperm.xlu0 %709, %v296
        %v711 = vpop.permute.xlu0 %710
        %v713 = vlaneseq
        %v714 = vshrl.u32 %v713, 7
        %v715 = vsub.s32 3, %v714
        %v716 = vrot.slane %v297, %v715
        %v717 = vsub.f32 %v651, %v716
        %v718 = vsub.f32 %v655, %v716
        %v719 = vsub.f32 %v659, %v716
        %v720 = vsub.f32 %v663, %v716
        %v721 = vsub.f32 %v667, %v716
        %v722 = vsub.f32 %v671, %v716
        %v723 = vsub.f32 %v675, %v716
        %v724 = vsub.f32 %v679, %v716
        %v725 = vsub.f32 %v683, %v716
        %v726 = vsub.f32 %v687, %v716
        %v727 = vsub.f32 %v691, %v716
        %v728 = vsub.f32 %v695, %v716
        %v729 = vsub.f32 %v699, %v716
        %v730 = vsub.f32 %v703, %v716
        %v731 = vsub.f32 %v707, %v716
        %v732 = vsub.f32 %v711, %v716
        %v733 = vmul.f32 %v717, %v717
        %v734 = vmul.f32 %v718, %v718
        %v735 = vmul.f32 %v719, %v719
        %v736 = vmul.f32 %v720, %v720
        %v737 = vmul.f32 %v721, %v721
        %v738 = vmul.f32 %v722, %v722
        %v739 = vmul.f32 %v723, %v723
        %v740 = vmul.f32 %v724, %v724
        %v741 = vmul.f32 %v725, %v725
        %v742 = vmul.f32 %v726, %v726
        %v743 = vmul.f32 %v727, %v727
        %v744 = vmul.f32 %v728, %v728
        %v745 = vmul.f32 %v729, %v729
        %v746 = vmul.f32 %v730, %v730
        %v747 = vmul.f32 %v731, %v731
        %v748 = vmul.f32 %v732, %v732
        %v749 = vadd.f32 %v633, %v733
        %v750 = vadd.f32 %v634, %v734
        %v751 = vadd.f32 %v635, %v735
        %v752 = vadd.f32 %v636, %v736
        %v753 = vadd.f32 %v637, %v737
        %v754 = vadd.f32 %v638, %v738
        %v755 = vadd.f32 %v639, %v739
        %v756 = vadd.f32 %v640, %v740
        %v757 = vadd.f32 %v641, %v741
        %v758 = vadd.f32 %v642, %v742
        %v759 = vadd.f32 %v643, %v743
        %v760 = vadd.f32 %v644, %v744
        %v761 = vadd.f32 %v645, %v745
        %v762 = vadd.f32 %v646, %v746
        %v763 = vadd.f32 %v647, %v747
        %v764 = vadd.f32 %v648, %v748
        %v765 = vstv %s300
        %v766 = vmul.f32 %v749, %v765
        %v767 = vmul.f32 %v750, %v765
        %v768 = vmul.f32 %v751, %v765
        %v769 = vmul.f32 %v752, %v765
        %v770 = vmul.f32 %v753, %v765
        %v771 = vmul.f32 %v754, %v765
        %v772 = vmul.f32 %v755, %v765
        %v773 = vmul.f32 %v756, %v765
        %v774 = vmul.f32 %v757, %v765
        %v775 = vmul.f32 %v758, %v765
        %v776 = vmul.f32 %v759, %v765
        %v777 = vmul.f32 %v760, %v765
        %v778 = vmul.f32 %v761, %v765
        %v779 = vmul.f32 %v762, %v765
        %v780 = vmul.f32 %v763, %v765
        %v781 = vmul.f32 %v764, %v765
        %v782 = vmul.f32 %v766, 1.442695
        %v783 = vpow.pop %v782
        %v784 = vmul.f32 %v767, 1.442695
        %v785 = vpow.pop %v784
        %v786 = vmul.f32 %v768, 1.442695
        %v787 = vpow.pop %v786
        %v788 = vmul.f32 %v769, 1.442695
        %v789 = vpow.pop %v788
        %v790 = vmul.f32 %v770, 1.442695
        %v791 = vpow.pop %v790
        %v792 = vmul.f32 %v771, 1.442695
        %v793 = vpow.pop %v792
        %v794 = vmul.f32 %v772, 1.442695
        %v795 = vpow.pop %v794
        %v796 = vmul.f32 %v773, 1.442695
        %v797 = vpow.pop %v796
        %v798 = vmul.f32 %v774, 1.442695
        %v799 = vpow.pop %v798
        %v800 = vmul.f32 %v775, 1.442695
        %v801 = vpow.pop %v800
        %v802 = vmul.f32 %v776, 1.442695
        %v803 = vpow.pop %v802
        %v804 = vmul.f32 %v777, 1.442695
        %v805 = vpow.pop %v804
        %v806 = vmul.f32 %v778, 1.442695
        %v807 = vpow.pop %v806
        %v808 = vmul.f32 %v779, 1.442695
        %v809 = vpow.pop %v808
        %v810 = vmul.f32 %v780, 1.442695
        %v811 = vpow.pop %v810
        %v812 = vmul.f32 %v781, 1.442695
        %v813 = vpow.pop %v812
        %vm814 = vcmp.gt.f32.partialorder %v517, 0.0
        %vm815 = vcmp.gt.f32.partialorder %v518, 0.0
        %vm816 = vcmp.gt.f32.partialorder %v519, 0.0
        %vm817 = vcmp.gt.f32.partialorder %v520, 0.0
        %vm818 = vcmp.gt.f32.partialorder %v521, 0.0
        %vm819 = vcmp.gt.f32.partialorder %v522, 0.0
        %vm820 = vcmp.gt.f32.partialorder %v523, 0.0
        %vm821 = vcmp.gt.f32.partialorder %v524, 0.0
        %vm822 = vcmp.gt.f32.partialorder %v525, 0.0
        %vm823 = vcmp.gt.f32.partialorder %v526, 0.0
        %vm824 = vcmp.gt.f32.partialorder %v527, 0.0
        %vm825 = vcmp.gt.f32.partialorder %v528, 0.0
        %vm826 = vcmp.gt.f32.partialorder %v529, 0.0
        %vm827 = vcmp.gt.f32.partialorder %v530, 0.0
        %vm828 = vcmp.gt.f32.partialorder %v531, 0.0
        %vm829 = vcmp.gt.f32.partialorder %v532, 0.0
        %v830 = vrsqrt.pop %v517
        %v831 = vrsqrt.pop %v518
        %v832 = vrsqrt.pop %v519
        %v833 = vrsqrt.pop %v520
        %v834 = vrsqrt.pop %v521
        %v835 = vrsqrt.pop %v522
        %v836 = vrsqrt.pop %v523
        %v837 = vrsqrt.pop %v524
        %v838 = vrsqrt.pop %v525
        %v839 = vrsqrt.pop %v526
        %v840 = vrsqrt.pop %v527
        %v841 = vrsqrt.pop %v528
        %v842 = vrsqrt.pop %v529
        %v843 = vrsqrt.pop %v530
        %v844 = vrsqrt.pop %v531
        %v845 = vrsqrt.pop %v532
        %v846 = vsel %vm814, %v830, 1.0
        %v847 = vsel %vm815, %v831, 1.0
        %v848 = vsel %vm816, %v832, 1.0
        %v849 = vsel %vm817, %v833, 1.0
        %v850 = vsel %vm818, %v834, 1.0
        %v851 = vsel %vm819, %v835, 1.0
        %v852 = vsel %vm820, %v836, 1.0
        %v853 = vsel %vm821, %v837, 1.0
        %v854 = vsel %vm822, %v838, 1.0
        %v855 = vsel %vm823, %v839, 1.0
        %v856 = vsel %vm824, %v840, 1.0
        %v857 = vsel %vm825, %v841, 1.0
        %v858 = vsel %vm826, %v842, 1.0
        %v859 = vsel %vm827, %v843, 1.0
        %v860 = vsel %vm828, %v844, 1.0
        %v861 = vsel %vm829, %v845, 1.0
        %v862 = vmul.f32 %v783, %v846
        %v863 = vmul.f32 %v785, %v847
        %v864 = vmul.f32 %v787, %v848
        %v865 = vmul.f32 %v789, %v849
        %v866 = vmul.f32 %v791, %v850
        %v867 = vmul.f32 %v793, %v851
        %v868 = vmul.f32 %v795, %v852
        %v869 = vmul.f32 %v797, %v853
        %v870 = vmul.f32 %v799, %v854
        %v871 = vmul.f32 %v801, %v855
        %v872 = vmul.f32 %v803, %v856
        %v873 = vmul.f32 %v805, %v857
        %v874 = vmul.f32 %v807, %v858
        %v875 = vmul.f32 %v809, %v859
        %v876 = vmul.f32 %v811, %v860
        %v877 = vmul.f32 %v813, %v861
        %v878 = vmul.f32 %v862, %v385
        %v879 = vmul.f32 %v863, %v386
        %v880 = vmul.f32 %v864, %v387
        %v881 = vmul.f32 %v865, %v388
        %v882 = vmul.f32 %v866, %v389
        %v883 = vmul.f32 %v867, %v390
        %v884 = vmul.f32 %v868, %v391
        %v885 = vmul.f32 %v869, %v392
        %v886 = vmul.f32 %v870, %v393
        %v887 = vmul.f32 %v871, %v394
        %v888 = vmul.f32 %v872, %v395
        %v889 = vmul.f32 %v873, %v396
        %v890 = vmul.f32 %v874, %v397
        %v891 = vmul.f32 %v875, %v398
        %v892 = vmul.f32 %v876, %v399
        %v893 = vmul.f32 %v877, %v400
        %894 = vst [vmem:[%s254] sm:$0xff] %v878
        %895 = vst [vmem:[%s254 + $0x8] sm:$0xff] %v879
        %896 = vst [vmem:[%s254 + $0x10] sm:$0xff] %v880
        %897 = vst [vmem:[%s254 + $0x18] sm:$0xff] %v881
        %898 = vst [vmem:[%s254 + $0x20] sm:$0xff] %v882
        %899 = vst [vmem:[%s254 + $0x28] sm:$0xff] %v883
        %900 = vst [vmem:[%s254 + $0x30] sm:$0xff] %v884
        %901 = vst [vmem:[%s254 + $0x38] sm:$0xff] %v885
        %902 = vst [vmem:[%s254 + $0x40] sm:$0xff] %v886
        %903 = vst [vmem:[%s254 + $0x48] sm:$0xff] %v887
        %904 = vst [vmem:[%s254 + $0x50] sm:$0xff] %v888
        %905 = vst [vmem:[%s254 + $0x58] sm:$0xff] %v889
        %906 = vst [vmem:[%s254 + $0x60] sm:$0xff] %v890
        %907 = vst [vmem:[%s254 + $0x68] sm:$0xff] %v891
        %908 = vst [vmem:[%s254 + $0x70] sm:$0xff] %v892
        %909 = vst [vmem:[%s254 + $0x78] sm:$0xff] %v893
        %v910 = vmul.f32 %v862, %v469
        %v911 = vmul.f32 %v863, %v470
        %v912 = vmul.f32 %v864, %v471
        %v913 = vmul.f32 %v865, %v472
        %v914 = vmul.f32 %v866, %v473
        %v915 = vmul.f32 %v867, %v474
        %v916 = vmul.f32 %v868, %v475
        %v917 = vmul.f32 %v869, %v476
        %v918 = vmul.f32 %v870, %v477
        %v919 = vmul.f32 %v871, %v478
        %v920 = vmul.f32 %v872, %v479
        %v921 = vmul.f32 %v873, %v480
        %v922 = vmul.f32 %v874, %v481
        %v923 = vmul.f32 %v875, %v482
        %v924 = vmul.f32 %v876, %v483
        %v925 = vmul.f32 %v877, %v484
        %926 = vst [vmem:[%s261] sm:$0xff] %v910
        %927 = vst [vmem:[%s261 + $0x8] sm:$0xff] %v911
        %928 = vst [vmem:[%s261 + $0x10] sm:$0xff] %v912
        %929 = vst [vmem:[%s261 + $0x18] sm:$0xff] %v913
        %930 = vst [vmem:[%s261 + $0x20] sm:$0xff] %v914
        %931 = vst [vmem:[%s261 + $0x28] sm:$0xff] %v915
        %932 = vst [vmem:[%s261 + $0x30] sm:$0xff] %v916
        %933 = vst [vmem:[%s261 + $0x38] sm:$0xff] %v917
        %934 = vst [vmem:[%s261 + $0x40] sm:$0xff] %v918
        %935 = vst [vmem:[%s261 + $0x48] sm:$0xff] %v919
        %936 = vst [vmem:[%s261 + $0x50] sm:$0xff] %v920
        %937 = vst [vmem:[%s261 + $0x58] sm:$0xff] %v921
        %938 = vst [vmem:[%s261 + $0x60] sm:$0xff] %v922
        %939 = vst [vmem:[%s261 + $0x68] sm:$0xff] %v923
        %940 = vst [vmem:[%s261 + $0x70] sm:$0xff] %v924
        %941 = vst [vmem:[%s261 + $0x78] sm:$0xff] %v925
        %s942 = sand.u32 %s131, 1
        %s943 = scalar_lea.sflag [#allocation4], %s942
        %s944 = sand.u32 %s131, 1
        %s945 = smul.addr %s944, 128
        %s946 = scalar_lea.vmem [#allocation3], %s945
        %s947 = sand.u32 %s161, 1
        %s948 = scalar_lea.sflag [#allocation6], %s947
        %s949 = sand.u32 %s161, 1
        %s950 = smul.addr %s949, 128
        %s951 = scalar_lea.vmem [#allocation5], %s950
        // Predicated region
        $region33: #{tpu_custom_call.1} parent=31 // pred_check
          %p952 = pneg %p141
        $region34: #{tpu_custom_call.1} parent=31 // pred_check_branch
          %954 = sbr.rel (%p952) target = $region36
        $region35: #{tpu_custom_call.1} parent=31 // pred_region
          %s955 = smul.u32 16, %s29
          %s957 = ssub.s32 2048, 2048
          %958 = vsyncadd %s943, %s957
          %s959 = sadd.s32 %s30, %s955
          %s960 = smul.addr %s28, 16
          %s961 = sadd.s32 %s959, %s960
          %s962 = smul.addr %s961, 128
          %s963 = scalar_lea.hbm %s3, %s962
          %s964 = sshll.u32 %s946, 4
          %s965 = int_to_ptr.vmem [resolvable:$true] %s964
          %970 = dma.vmem_to_hbm [thread:$0]  %s965, 2048, %s963, %s943, 128, 128, 8
        $region36: #{tpu_custom_call.1} parent=31 // pred_fallthru
          _
        // Predicated region
        $region37: #{tpu_custom_call.1} parent=31 // pred_check
          %p971 = pneg %p171
        $region38: #{tpu_custom_call.1} parent=31 // pred_check_branch
          %973 = sbr.rel (%p971) target = $region40
        $region39: #{tpu_custom_call.1} parent=31 // pred_region
          %s974 = smul.u32 16, %s29
          %s976 = ssub.s32 2048, 2048
          %977 = vsyncadd %s948, %s976
          %s978 = sadd.s32 %s30, %s974
          %s979 = smul.addr %s28, 16
          %s980 = sadd.s32 %s978, %s979
          %s981 = smul.addr %s980, 128
          %s982 = scalar_lea.hbm %s4, %s981
          %s983 = sshll.u32 %s951, 4
          %s984 = int_to_ptr.vmem [resolvable:$true] %s983
          %989 = dma.vmem_to_hbm [thread:$0]  %s984, 2048, %s982, %s948, 128, 128, 8
        $region40: #{tpu_custom_call.1} parent=31 // pred_fallthru
          _
      $region32: #{tpu_custom_call.1} parent=5 // pred_fallthru
        _
      %p990 = scmp.le.s32.totalorder 2, %s18
      // Predicated region
      $region41: #{tpu_custom_call.1} parent=5 // pred_check
        %p991 = pneg %p990
      $region42: #{tpu_custom_call.1} parent=5 // pred_check_branch
        %993 = sbr.rel (%p991) target = $region44
      $region43: #{tpu_custom_call.1} parent=5 // pred_region
        %s994 = ssub.s32 %s18, 2
        // Predicated region
        $region45: #{tpu_custom_call.1} parent=43 // pred_check
          %p995 = pneg %p147
        $region46: #{tpu_custom_call.1} parent=43 // pred_check_branch
          %997 = sbr.rel (%p995) target = $region48
        $region47: #{tpu_custom_call.1} parent=43 // pred_region
          %s998 = sand.u32 %s132, 1
          %s999 = scalar_lea.sflag [#allocation4], %s998
          %s1000 = sand.u32 %s132, 1
          %s1001 = smul.addr %s1000, 128
          %s1002 = scalar_lea.vmem [#allocation3], %s1001
          %1003 = dma.done %s999, 2048
        $region48: #{tpu_custom_call.1} parent=43 // pred_fallthru
          _
        // Predicated region
        $region49: #{tpu_custom_call.1} parent=43 // pred_check
          %p1004 = pneg %p177
        $region50: #{tpu_custom_call.1} parent=43 // pred_check_branch
          %1006 = sbr.rel (%p1004) target = $region52
        $region51: #{tpu_custom_call.1} parent=43 // pred_region
          %s1007 = sand.u32 %s162, 1
          %s1008 = scalar_lea.sflag [#allocation6], %s1007
          %s1009 = sand.u32 %s162, 1
          %s1010 = smul.addr %s1009, 128
          %s1011 = scalar_lea.vmem [#allocation5], %s1010
          %1012 = dma.done %s1008, 2048
        $region52: #{tpu_custom_call.1} parent=43 // pred_fallthru
          _
      $region44: #{tpu_custom_call.1} parent=5 // pred_fallthru
        _
    $region6: #{tpu_custom_call.1} parent=1 // loop_footer
      %s22 = sadd.s32 1, %s18
    $region7: #{tpu_custom_call.1} parent=1 // loop_footer_branch
      %17 = sbr.rel target = $region3
    $region8: #{tpu_custom_call.1} parent=1 // loop_exit
      _
    %1013 = vsyncpa [#allocation4], 1
    %s1014 = scalar_lea.sflag [#allocation4], 1
    %1015 = vsyncpa %s1014, 1
    %1016 = vsyncpa [#allocation6], 1
    %s1017 = scalar_lea.sflag [#allocation6], 1
    %1018 = vsyncpa %s1017, 1

</llo_original>
